<compile_context>
chip_gen: v5e
topology: v5e:2x2
jax: 0.10.0
libtpu: 0.0.40
codegen_flags: <defaults>
</compile_context>

<pallas_src>
import functools

import jax
import jax.numpy as jnp
from jax.experimental import pallas as pl
from jax.experimental.pallas import tpu as pltpu

_LANES = 128
_SUBLANES = 8
_ACC_CHUNK_ROWS = 256            # rows folded into the accumulator per inner step
_ELEM_BLOCK_ELEMS = 256 * 1024   # ~1 MiB f32 per array per block (reduce=False path)


def _kl_elem(x, t):
    """target * (log(target) - input), with 0 where target <= 0 (THNN rule).

    NOTE: jnp.where is an element *select*; it also shields NaN/Inf produced by
    log() on garbage rows of ragged blocks.  Do not turn this into a
    multiplicative mask.
    """
    safe_t = jnp.where(t > 0, t, 1.0)
    return jnp.where(t > 0, t * (jnp.log(safe_t) - x), 0.0)


def _row_quantum(dtype):
    """Sublane packing granularity: 8 rows (4-byte), 16 (2-byte), 32 (1-byte)."""
    itemsize = jnp.dtype(dtype).itemsize
    return max(_SUBLANES, _SUBLANES * 4 // max(itemsize, 1))


def _reduce_tile_config():
    """(max_rows_per_tile, num_splits, vmem_limit_bytes) per TPU generation."""
    try:
        kind = jax.devices()[0].device_kind.lower()
    except Exception:
        kind = ""
    if "v7" in kind:
        # 2 TensorCores, 32 MiB default scoped VMEM per core: 2 MiB tiles and a
        # 2-way "parallel" split so both cores stream half of the rows.
        return 4096, 2, None
    if "v6" in kind:
        # Single TC, 128 MiB physical VMEM: 4 MiB tiles + raised scoped limit.
        return 8192, 1, 64 * 1024 * 1024
    # v5e (16 MiB default scoped VMEM) and anything unknown: 2 MiB tiles.
    return 4096, 1, None


# --------------------------- reduce=True path ------------------------------ #

def _kl_sum_kernel(x_ref, t_ref, part_ref, acc_ref, *,
                   rows_per_tile, rows_last, num_tiles, tiles_per_split,
                   num_splits, chunk_rows):
    i = pl.program_id(0)   # split axis ("parallel"; >1 only on v7x)
    j = pl.program_id(1)   # reduction axis ("arbitrary")
    tile_idx = i * tiles_per_split + j

    @pl.when(j == 0)
    def _():
        acc_ref[...] = jnp.zeros_like(acc_ref)

    def add_rows(row0, nrows):
        x = x_ref[pl.ds(row0, nrows), :].astype(jnp.float32)
        t = t_ref[pl.ds(row0, nrows), :].astype(jnp.float32)
        contrib = _kl_elem(x, t)
        # Fold to one (8, 128) vreg with pure VPU adds; the final cross-lane
        # reduce happens once, wrapper-side, on a few KiB of partials.
        acc_ref[...] += contrib.reshape(-1, _SUBLANES, _LANES).sum(axis=0)

    def accumulate(valid_rows):
        # Chunked accumulation keeps the live vreg set small (one ~256x128
        # chunk at a time) while the pipelined DMA tile stays large.
        full_chunks = valid_rows // chunk_rows
        rem_rows = valid_rows - full_chunks * chunk_rows
        if full_chunks > 0:
            @pl.loop(0, full_chunks)
            def _(c):
                add_rows(pl.multiple_of(c * chunk_rows, chunk_rows), chunk_rows)
        if rem_rows > 0:
            add_rows(full_chunks * chunk_rows, rem_rows)

    def run_tile():
        if rows_last == rows_per_tile:
            accumulate(rows_per_tile)
        else:
            # Only the last tile is ragged; its valid row count is static, so
            # it simply reads fewer rows -- no per-element masking needed.
            @pl.when(tile_idx < num_tiles - 1)
            def _():
                accumulate(rows_per_tile)

            @pl.when(tile_idx == num_tiles - 1)
            def _():
                accumulate(rows_last)

    if tiles_per_split * num_splits > num_tiles:
        # Clamped duplicate tiles (split rounding on v7x) are skipped entirely.
        @pl.when(tile_idx < num_tiles)
        def _():
            run_tile()
    else:
        run_tile()

    @pl.when(j == pl.num_programs(1) - 1)
    def _():
        part_ref[0] = acc_ref[...]


def _kl_div_reduced(input, target, size_average):
    n = input.size
    flat_x = input.reshape(-1)
    flat_t = target.reshape(-1)

    q = _row_quantum(input.dtype)                 # 8 (f32) / 16 (bf16) rows
    max_rows, num_splits, vmem_limit = _reduce_tile_config()

    tail_sum = None
    if n % _LANES != 0 or n < q * _LANES:
        # Rare: partial 128-lane row (or tiny input).  Pad with zeros -- a zero
        # target contributes exactly 0 -- this is the only case that costs an
        # extra HBM copy of the inputs.
        chunk = q * _LANES
        padded = pl.cdiv(n, chunk) * chunk
        flat_x = jnp.pad(flat_x, (0, padded - n))
        flat_t = jnp.pad(flat_t, (0, padded - n))
        total_rows = padded // _LANES
        body_rows = total_rows
    else:
        # Zero-copy reshape.  The last (total_rows % q) rows (< q*128 elements)
        # are folded in with plain jnp so every kernel block stays aligned to
        # the dtype's sublane packing; the kernel simply never reads them.
        total_rows = n // _LANES
        body_rows = (total_rows // q) * q
        if body_rows != total_rows:
            xt = flat_x[body_rows * _LANES:].astype(jnp.float32)
            tt = flat_t[body_rows * _LANES:].astype(jnp.float32)
            tail_sum = jnp.sum(_kl_elem(xt, tt))

    xs = flat_x.reshape(total_rows, _LANES)
    ts = flat_t.reshape(total_rows, _LANES)

    rows_per_tile = body_rows if body_rows <= max_rows else max_rows
    num_tiles = pl.cdiv(body_rows, rows_per_tile)
    num_splits = min(num_splits, num_tiles)
    tiles_per_split = pl.cdiv(num_tiles, num_splits)
    rows_last = body_rows - (num_tiles - 1) * rows_per_tile

    if tiles_per_split * num_splits == num_tiles:
        def in_map(i, j):
            return (i * tiles_per_split + j, 0)
    else:
        def in_map(i, j):
            # Clamp so duplicate (rounded) tiles read a valid block; their
            # contribution is skipped inside the kernel.
            return (jnp.minimum(i * tiles_per_split + j, num_tiles - 1), 0)

    kernel = functools.partial(
        _kl_sum_kernel,
        rows_per_tile=rows_per_tile,
        rows_last=rows_last,
        num_tiles=num_tiles,
        tiles_per_split=tiles_per_split,
        num_splits=num_splits,
        chunk_rows=_ACC_CHUNK_ROWS,
    )

    cp_kwargs = dict(dimension_semantics=("parallel", "arbitrary"))
    if vmem_limit is not None:
        cp_kwargs["vmem_limit_bytes"] = vmem_limit

    partials = pl.pallas_call(
        kernel,
        out_shape=jax.ShapeDtypeStruct((num_splits, _SUBLANES, _LANES),
                                       jnp.float32),
        grid=(num_splits, tiles_per_split),
        in_specs=[pl.BlockSpec((rows_per_tile, _LANES), in_map),
                  pl.BlockSpec((rows_per_tile, _LANES), in_map)],
        out_specs=pl.BlockSpec((1, _SUBLANES, _LANES), lambda i, j: (i, 0, 0)),
        scratch_shapes=[pltpu.VMEM((_SUBLANES, _LANES), jnp.float32)],
        compiler_params=pltpu.CompilerParams(**cp_kwargs),
    )(xs, ts)

    total = jnp.sum(partials)
    if tail_sum is not None:
        total = total + tail_sum
    if size_average:
        total = total / n
    return total


# --------------------------- reduce=False path ----------------------------- #

def _kl_elem_kernel(x_ref, t_ref, o_ref):
    x = x_ref[...].astype(jnp.float32)
    t = t_ref[...].astype(jnp.float32)
    o_ref[...] = _kl_elem(x, t).astype(o_ref.dtype)


def _kl_div_elementwise(input, target):
    n = input.size
    # Widest lane-dense slab that divides n: a last dim that is a large
    # multiple of 128 gives unmasked wide vector stores (this path writes as
    # many bytes as it reads, so store efficiency matters).
    width = next((w for w in (1024, 512, 256, 128) if n % w == 0), None)
    if width is None:
        # Rare: partial 128-lane row.  Pad (costs an extra copy in and out).
        width = _LANES
        rows = pl.cdiv(n, width)
        pad = rows * width - n
        xf = jnp.pad(input.reshape(-1), (0, pad)).reshape(rows, width)
        tf = jnp.pad(target.reshape(-1), (0, pad)).reshape(rows, width)
        padded = True
    else:
        rows = n // width
        xf = input.reshape(rows, width)
        tf = target.reshape(rows, width)
        padded = False

    max_block_rows = max(32, _ELEM_BLOCK_ELEMS // width)
    if rows <= max_block_rows:
        block_rows = rows                          # single full-extent block
    else:
        block_rows = (max_block_rows // 32) * 32   # packing-safe for f32/bf16/int8

    out = pl.pallas_call(
        _kl_elem_kernel,
        out_shape=jax.ShapeDtypeStruct((rows, width), input.dtype),
        grid=(pl.cdiv(rows, block_rows),),
        in_specs=[pl.BlockSpec((block_rows, width), lambda i: (i, 0)),
                  pl.BlockSpec((block_rows, width), lambda i: (i, 0))],
        out_specs=pl.BlockSpec((block_rows, width), lambda i: (i, 0)),
        compiler_params=pltpu.CompilerParams(dimension_semantics=("parallel",)),
    )(xf, tf)

    if padded:
        return out.reshape(-1)[:n].reshape(input.shape)
    return out.reshape(input.shape)


# ------------------------------- public API -------------------------------- #

def kl_div_loss(input, target, size_average=True, reduce=True):
    """Pallas TPU implementation of F.kl_div forward semantics."""
    assert input.shape == target.shape, "input and target must have the same shape"
    assert input.size > 0
    if not reduce:
        return _kl_div_elementwise(input, target)
    return _kl_div_reduced(input, target, size_average)


class KLDivLoss:
    """Mirror of torch.nn.KLDivLoss (forward only). No parameters."""
    # TODO(synk): _assert_no_grad / autograd bookkeeping has no JAX equivalent here.

    def __init__(self, size_average=True, reduce=True):
        self.size_average = size_average
        self.reduce = reduce
        self._fn = jax.jit(functools.partial(
            kl_div_loss, size_average=size_average, reduce=reduce))

    def __call__(self, input, target):
        return self._fn(input, target)


if __name__ == "__main__":
    key = jax.random.PRNGKey(0)
    k1, k2, k3, k4 = jax.random.split(key, 4)

    def ref_elem(xx, tt):
        return jnp.where(tt > 0, tt * (jnp.log(jnp.where(tt > 0, tt, 1.0)) - xx), 0.0)

    # (N, C, H, W): input = log-probabilities, target = probabilities.
    shape = (2, 4, 16, 16)
    x = jax.nn.log_softmax(jax.random.normal(k1, shape, dtype=jnp.float32), axis=1)
    t = jax.nn.softmax(jax.random.normal(k2, shape, dtype=jnp.float32), axis=1)

    out_mean = KLDivLoss(size_average=True, reduce=True)(x, t)
    jax.block_until_ready(out_mean)
    assert jnp.allclose(out_mean, jnp.mean(ref_elem(x, t)), rtol=1e-5, atol=1e-5)

    out_sum = KLDivLoss(size_average=False, reduce=True)(x, t)
    jax.block_until_ready(out_sum)
    assert jnp.allclose(out_sum, jnp.sum(ref_elem(x, t)), rtol=1e-5, atol=1e-4)

    out_elem = KLDivLoss(reduce=False)(x, t)
    jax.block_until_ready(out_elem)
    assert out_elem.shape == x.shape
    assert jnp.allclose(out_elem, ref_elem(x, t), rtol=1e-5, atol=1e-6)

    # Element count not a multiple of 128: exercises the (rare) padded path.
    shape2 = (3, 5, 7)
    x2 = jax.nn.log_softmax(jax.random.normal(k3, shape2, dtype=jnp.float32), axis=-1)
    t2 = jax.nn.softmax(jax.random.normal(k4, shape2, dtype=jnp.float32), axis=-1)

    out2 = KLDivLoss(size_average=True, reduce=True)(x2, t2)
    jax.block_until_ready(out2)
    assert jnp.allclose(out2, jnp.mean(ref_elem(x2, t2)), rtol=1e-5, atol=1e-5)

    out2e = KLDivLoss(reduce=False)(x2, t2)
    jax.block_until_ready(out2e)
    assert out2e.shape == x2.shape
    assert jnp.allclose(out2e, ref_elem(x2, t2), rtol=1e-5, atol=1e-6)

    print("KERNEL_OK")
</pallas_src>

<mosaic_0001>
module attributes {stable_mosaic.version = 11 : i64} {
  func.func @_kl_sum_kernel(%arg0: i32, %arg1: i32, %arg2: memref<16x128xf32, #tpu.memory_space<vmem>>, %arg3: memref<16x128xf32, #tpu.memory_space<vmem>>, %arg4: memref<1x8x128xf32, #tpu.memory_space<vmem>>, %arg5: memref<8x128xf32, #tpu.memory_space<vmem>>) attributes {dimension_semantics = [#tpu.dimension_semantics<parallel>, #tpu.dimension_semantics<arbitrary>], iteration_bounds = array<i64: 1, 1>, scalar_prefetch = 0 : i64, scratch_operands = 1 : i64, tpu.core_type = #tpu.core_type<tc>, window_params = [{transform_indices = @transform_0, window_bounds = array<i64: 16, 128>}, {transform_indices = @transform_1, window_bounds = array<i64: 16, 128>}, {transform_indices = @transform_2, window_bounds = array<i64: 1, 8, 128>}]} {
    %c0_i32 = arith.constant 0 : i32
    %0 = arith.cmpi eq, %arg1, %c0_i32 : i32
    %1 = arith.extui %0 : i1 to i32
    %c0_i32_0 = arith.constant 0 : i32
    %2 = arith.cmpi ne, %1, %c0_i32_0 : i32
    scf.if %2 {
      %cst_14 = arith.constant 0.000000e+00 : f32
      %24 = vector.broadcast %cst_14 : f32 to vector<8x128xf32>
      %c0_15 = arith.constant 0 : index
      %c0_16 = arith.constant 0 : index
      %25 = vector.load %arg5[%c0_15, %c0_16] : memref<8x128xf32, #tpu.memory_space<vmem>>, vector<8x128xf32>
      tpu.vector_store %arg5[%c0_15, %c0_16], %24 {strides = array<i32>} : memref<8x128xf32, #tpu.memory_space<vmem>>, vector<8x128xf32>,
    } else {
    }
    %c0 = arith.constant 0 : index
    %c0_1 = arith.constant 0 : index
    %3 = vector.load %arg2[%c0, %c0_1] : memref<16x128xf32, #tpu.memory_space<vmem>>, vector<16x128xf32>
    %c0_2 = arith.constant 0 : index
    %c0_3 = arith.constant 0 : index
    %4 = vector.load %arg3[%c0_2, %c0_3] : memref<16x128xf32, #tpu.memory_space<vmem>>, vector<16x128xf32>
    %cst = arith.constant 0.000000e+00 : f32
    %5 = vector.broadcast %cst : f32 to vector<16x128xf32>
    %6 = arith.cmpf ogt, %4, %5 : vector<16x128xf32>
    %cst_4 = arith.constant 1.000000e+00 : f32
    %7 = vector.broadcast %cst_4 : f32 to vector<16x128xf32>
    %8 = arith.select %6, %4, %7 : vector<16x128xi1>, vector<16x128xf32>
    %cst_5 = arith.constant 0.000000e+00 : f32
    %9 = vector.broadcast %cst_5 : f32 to vector<16x128xf32>
    %10 = arith.cmpf ogt, %4, %9 : vector<16x128xf32>
    %11 = math.log %8 : vector<16x128xf32>
    %12 = arith.subf %11, %3 : vector<16x128xf32>
    %13 = arith.mulf %4, %12 : vector<16x128xf32>
    %cst_6 = arith.constant 0.000000e+00 : f32
    %14 = vector.broadcast %cst_6 : f32 to vector<16x128xf32>
    %15 = arith.select %10, %13, %14 : vector<16x128xi1>, vector<16x128xf32>
    %c0_7 = arith.constant 0 : index
    %c0_8 = arith.constant 0 : index
    %16 = vector.load %arg5[%c0_7, %c0_8] : memref<8x128xf32, #tpu.memory_space<vmem>>, vector<8x128xf32>
    %17 = vector.shape_cast %15 : vector<16x128xf32> to vector<2x8x128xf32>
    %cst_9 = arith.constant dense<0.000000e+00> : vector<8x128xf32>
    %18 = vector.multi_reduction <add>, %17, %cst_9 [0] : vector<2x8x128xf32> to vector<8x128xf32>
    %19 = arith.addf %16, %18 : vector<8x128xf32>
    %c0_10 = arith.constant 0 : index
    %c0_11 = arith.constant 0 : index
    %20 = vector.load %arg5[%c0_10, %c0_11] : memref<8x128xf32, #tpu.memory_space<vmem>>, vector<8x128xf32>
    tpu.vector_store %arg5[%c0_10, %c0_11], %19 {strides = array<i32>} : memref<8x128xf32, #tpu.memory_space<vmem>>, vector<8x128xf32>,
    %c0_i32_12 = arith.constant 0 : i32
    %21 = arith.cmpi eq, %arg1, %c0_i32_12 : i32
    %22 = arith.extui %21 : i1 to i32
    %c0_i32_13 = arith.constant 0 : i32
    %23 = arith.cmpi ne, %22, %c0_i32_13 : i32
    scf.if %23 {
      %c0_14 = arith.constant 0 : index
      %c0_15 = arith.constant 0 : index
      %24 = vector.load %arg5[%c0_14, %c0_15] : memref<8x128xf32, #tpu.memory_space<vmem>>, vector<8x128xf32>
      %c0_16 = arith.constant 0 : index
      %c0_17 = arith.constant 0 : index
      %c0_18 = arith.constant 0 : index
      %25 = vector.load %arg4[%c0_16, %c0_17, %c0_18] : memref<1x8x128xf32, #tpu.memory_space<vmem>>, vector<1x8x128xf32>
      %26 = vector.shape_cast %25 : vector<1x8x128xf32> to vector<8x128xf32>
      %27 = vector.shape_cast %24 : vector<8x128xf32> to vector<1x8x128xf32>
      tpu.vector_store %arg4[%c0_16, %c0_17, %c0_18], %27 {strides = array<i32>} : memref<1x8x128xf32, #tpu.memory_space<vmem>>, vector<1x8x128xf32>,
    } else {
    }
    return
  }
  func.func @transform_0(%arg0: i32, %arg1: i32) -> (i32, i32) {
    %c1_i32 = arith.constant 1 : i32
    %0 = arith.muli %arg0, %c1_i32 : i32
    %1 = arith.addi %0, %arg1 : i32
    %c0_i32 = arith.constant 0 : i32
    %c0_i32_0 = arith.constant 0 : i32
    return %1, %c0_i32 : i32, i32
  }
  func.func @transform_1(%arg0: i32, %arg1: i32) -> (i32, i32) {
    %c1_i32 = arith.constant 1 : i32
    %0 = arith.muli %arg0, %c1_i32 : i32
    %1 = arith.addi %0, %arg1 : i32
    %c0_i32 = arith.constant 0 : i32
    %c0_i32_0 = arith.constant 0 : i32
    return %1, %c0_i32 : i32, i32
  }
  func.func @transform_2(%arg0: i32, %arg1: i32) -> (i32, i32, i32) {
    %c0_i32 = arith.constant 0 : i32
    %c0_i32_0 = arith.constant 0 : i32
    %c0_i32_1 = arith.constant 0 : i32
    return %arg0, %c0_i32, %c0_i32_0 : i32, i32, i32
  }
}

</mosaic_0001>

<llo_original>
// kernel: kl_div_loss.1
$region0: #{kl_div_loss.1}
  #allocation0 [shape = 'u32[]', space=smem, size = 0x4, offset = 0x4, fixed_abs, tag = 'smem constant byte address 0x4 - core index']
  #allocation1 [shape = 'u32[72,128]{1,0:T(1,128)}', space=vmem, size = 0x9000, scoped, tag = 'internal scratch']
  #allocation2 [shape = 'f32[8,128]{1,0:T(8,128)}', space=vmem, size = 0x1000, scoped, tag = 'scratch operand']
  %s0 = inlined_call_operand.vmem [shape: f32[16,128], index: 0, kind: input, shape index: {}]
  %s1 = inlined_call_operand.vmem [shape: f32[16,128], index: 1, kind: input, shape index: {}]
  %s2 = inlined_call_operand.vmem [shape: f32[1,8,128], index: 2, kind: output, shape index: {}]
  %s3 = sld [smem:[#allocation0]]
  $region26: #{kl_div_loss.1} parent=0
    _
  %s5 = ssub.s32 1, %s3
  %s6 = scalar_select 0, %s5, %s3
  // Predicated region
  $region2: #{kl_div_loss.1} parent=0 // pred_check
    _
  $region3: #{kl_div_loss.1} parent=0 // pred_check_branch
    %8 = sbr.rel (0) target = $region5
  $region4: #{kl_div_loss.1} parent=0 // pred_region
    %s9 = sadd.s32 0, 0
    %s10 = smul.u32 2, %s9
    %p11 = scmp.lt.s32.totalorder %s10, 1
    %s12 = scalar_select %p11, %s10, 1
    %s13 = smul.addr %s12, 8
    %s14 = scalar_lea.vmem %s0, %s13
    %s15 = sadd.s32 0, 0
    %s16 = smul.u32 2, %s15
  $region5: #{kl_div_loss.1} parent=0 // pred_fallthru
    _
  // Predicated region
  $region6: #{kl_div_loss.1} parent=0 // pred_check
    _
  $region7: #{kl_div_loss.1} parent=0 // pred_check_branch
    %18 = sbr.rel (0) target = $region9
  $region8: #{kl_div_loss.1} parent=0 // pred_region
    %s19 = sadd.s32 0, 0
    %s20 = smul.u32 2, %s19
    %p21 = scmp.lt.s32.totalorder %s20, 1
    %s22 = scalar_select %p21, %s20, 1
    %s23 = smul.addr %s22, 8
    %s24 = scalar_lea.vmem %s1, %s23
    %s25 = sadd.s32 0, 0
    %s26 = smul.u32 2, %s25
  $region9: #{kl_div_loss.1} parent=0 // pred_fallthru
    _
  %s27 = sadd.s32 0, 0
  %s28 = smul.u32 2, %s27
  %p29 = scmp.lt.s32.totalorder %s28, 1
  %s30 = scalar_select %p29, %s28, 1
  %s31 = smul.addr %s30, 8
  %s32 = scalar_lea.vmem %s0, %s31
  %s33 = sadd.s32 0, 0
  %s34 = smul.u32 2, %s33
  %p35 = scmp.lt.s32.totalorder %s34, 1
  %s36 = scalar_select %p35, %s34, 1
  %s37 = smul.addr %s36, 8
  %s38 = scalar_lea.vmem %s1, %s37
  %s39 = sadd.s32 0, 0
  %s40 = smul.u32 2, %s39
  %p41 = scmp.lt.s32.totalorder %s40, 1
  %s42 = scalar_select %p41, %s40, 1
  %s43 = smul.addr %s42, 8
  %s44 = scalar_lea.vmem %s0, %s43
  %s45 = sadd.s32 0, 0
  %s46 = smul.u32 2, %s45
  %s47 = sadd.s32 0, 0
  %s48 = smul.u32 2, %s47
  %p49 = scmp.lt.s32.totalorder %s48, 1
  %s50 = scalar_select %p49, %s48, 1
  %s51 = smul.addr %s50, 8
  %s52 = scalar_lea.vmem %s1, %s51
  %s53 = sadd.s32 0, 0
  %s54 = smul.u32 2, %s53
  %p55 = scmp.eq.s32.totalorder 0, 0
  // Predicated region
  $region10: #{kl_div_loss.1} parent=0 // pred_check
    %p56 = pneg %p55
  $region11: #{kl_div_loss.1} parent=0 // pred_check_branch
    %58 = sbr.rel (%p56) target = $region13
  $region12: #{kl_div_loss.1} parent=0 // pred_region
    %59 = vst [vmem:[#allocation2] sm:$0xff] 0.0
  $region13: #{kl_div_loss.1} parent=0 // pred_fallthru
    _
  %v60 = vld [vmem:[%s44] sm:$0xff]
  %v61 = vld [vmem:[%s44 + $0x8] sm:$0xff]
  %v62 = vld [vmem:[%s52] sm:$0xff]
  %v63 = vld [vmem:[%s52 + $0x8] sm:$0xff]
  %vm64 = vcmp.gt.f32.partialorder %v62, 0.0
  %vm65 = vcmp.gt.f32.partialorder %v63, 0.0
  %v66 = vsel %vm64, %v62, 1.0
  %v67 = vsel %vm65, %v63, 1.0
  %v68 = vlog2.pop %v66
  %v69 = vmul.f32 %v68, 0.6931472
  %v70 = vlog2.pop %v67
  %v71 = vmul.f32 %v70, 0.6931472
  %v72 = vsub.f32 %v69, %v60
  %v73 = vsub.f32 %v71, %v61
  %v74 = vmul.f32 %v62, %v72
  %v75 = vmul.f32 %v63, %v73
  %v76 = vsel %vm64, %v74, 0.0
  %v77 = vsel %vm65, %v75, 0.0
  %v78 = vld [vmem:[#allocation2] sm:$0xff]
  %v79 = vadd.f32 %v76, %v77
  %v80 = vadd.f32 %v78, %v79
  %81 = vst [vmem:[#allocation2] sm:$0xff] %v80
  // Predicated region
  $region14: #{kl_div_loss.1} parent=0 // pred_check
    %p82 = pneg %p55
  $region15: #{kl_div_loss.1} parent=0 // pred_check_branch
    %84 = sbr.rel (%p82) target = $region17
  $region16: #{kl_div_loss.1} parent=0 // pred_region
    %v85 = vld [vmem:[#allocation2] sm:$0xff]
    %86 = vst [vmem:[%s2] sm:$0xff] %v85
  $region17: #{kl_div_loss.1} parent=0 // pred_fallthru
    _
  // Predicated region
  $region18: #{kl_div_loss.1} parent=0 // pred_check
    _
  $region19: #{kl_div_loss.1} parent=0 // pred_check_branch
    %88 = sbr.rel (0) target = $region21
  $region20: #{kl_div_loss.1} parent=0 // pred_region
    _
  $region21: #{kl_div_loss.1} parent=0 // pred_fallthru
    _
  // Predicated region
  $region22: #{kl_div_loss.1} parent=0 // pred_check
    _
  $region23: #{kl_div_loss.1} parent=0 // pred_check_branch
    %90 = sbr.rel (0) target = $region25
  $region24: #{kl_div_loss.1} parent=0 // pred_region
    _
  $region25: #{kl_div_loss.1} parent=0 // pred_fallthru
    _

</llo_original>
